<compile_context>
chip_gen: v7x
topology: tpu7x:2x2x1
jax: 0.10.0
libtpu: 0.0.40
codegen_flags: <defaults>
</compile_context>

<pallas_src>
import functools

import jax
import jax.numpy as jnp
from jax import lax
from jax.experimental import pallas as pl
from jax.experimental.pallas import tpu as pltpu

LN_EPS = 1e-5  # torch.nn.LayerNorm default eps


def _round_up(x, m):
    return (x + m - 1) // m * m


def _layernorm(x, gamma, beta):
    mu = jnp.mean(x, axis=-1, keepdims=True)
    xc = x - mu
    var = jnp.mean(xc * xc, axis=-1, keepdims=True)  # biased, like torch
    return xc * lax.rsqrt(var + LN_EPS) * gamma + beta


def _critic_kernel(s_ref, a_ref, w1_ref, p1_ref, w2_ref, p2_ref, wa_ref,
                   head_ref, out_ref, *, mxu_dtype):
    # fc1(state) -> LayerNorm -> relu   (operands already in mxu_dtype)
    x = jnp.dot(s_ref[...], w1_ref[...], preferred_element_type=jnp.float32)
    x = x + p1_ref[0:1, :]
    x = _layernorm(x, p1_ref[1:2, :], p1_ref[2:3, :])
    x = jnp.maximum(x, 0.0)

    # fc2 -> LayerNorm -> relu  (only remaining per-step cast: activations)
    x = jnp.dot(x.astype(mxu_dtype), w2_ref[...],
                preferred_element_type=jnp.float32)
    x = x + p2_ref[0:1, :]
    x = _layernorm(x, p2_ref[1:2, :], p2_ref[2:3, :])
    x = jnp.maximum(x, 0.0)

    # action branch
    a = jnp.dot(a_ref[...], wa_ref[...], preferred_element_type=jnp.float32)
    a = jnp.maximum(a + head_ref[0:1, :], 0.0)

    sav = jnp.maximum(x + a, 0.0)                     # (tb, fc2), f32

    # q head as wq @ sav^T -> (1, tb): result lands directly along lanes so
    # the output store is lane-dense (no (tb,1) masked partial stores).
    q_row = lax.dot_general(head_ref[1:2, :], sav,
                            dimension_numbers=(((1,), (1,)), ((), ())),
                            preferred_element_type=jnp.float32)
    q_row = q_row + head_ref[2:3, 0:1]                # + q bias (scalar)
    out_ref[...] = q_row.reshape(out_ref.shape)       # (1, 1, tb)


def critic_forward(state, action, params, *, batch_tile=1024,
                   mxu_dtype=jnp.float32):
    """state: [B, input_dims], action: [B, n_actions] -> q: [B, 1] (f32)."""
    B, input_dims = state.shape
    n_actions = action.shape[1]
    fc1 = params["w1"].shape[1]
    fc2 = params["w2"].shape[1]

    # Batch tile: multiple of 8, at most batch_tile, and ~B/2 so that the grid
    # has >= 2 "parallel" steps whenever possible (v7x dual TensorCores).
    tb = max(8, min(batch_tile, _round_up(pl.cdiv(B, 2), 8)))
    grid_n = pl.cdiv(B, tb)            # ragged tail handled by Pallas masking

    # One-time wrapper-side cast of MXU operands (no per-step VPU casts, and
    # bf16 halves weight DMA/VMEM).  LN params / biases / head stay f32.
    state = state.astype(mxu_dtype)
    action = action.astype(mxu_dtype)
    w1 = params["w1"].astype(mxu_dtype)
    w2 = params["w2"].astype(mxu_dtype)
    wa = params["wa"].astype(mxu_dtype)
    p1 = jnp.concatenate([params["b1"], params["g1"], params["be1"]], axis=0)  # [3, fc1]
    p2 = jnp.concatenate([params["b2"], params["g2"], params["be2"]], axis=0)  # [3, fc2]
    head = jnp.concatenate(
        [params["ba"],                                             # action-branch bias
         params["wq"],                                             # q weight row [1, fc2]
         jnp.broadcast_to(params["bq"].reshape(1, 1), (1, fc2))],  # q bias
        axis=0)                                                    # [3, fc2]

    const = lambda i: (0, 0)  # parameters stay VMEM-resident across batch tiles

    w_bytes = jnp.dtype(mxu_dtype).itemsize
    b_total = grid_n * tb
    flops = 2 * b_total * (input_dims * fc1 + fc1 * fc2 + n_actions * fc2 + fc2)
    bytes_accessed = (w_bytes * b_total * (input_dims + n_actions)
                      + 4 * b_total
                      + w_bytes * (input_dims * fc1 + fc1 * fc2 + n_actions * fc2)
                      + 4 * (3 * fc1 + 6 * fc2))

    q3 = pl.pallas_call(
        functools.partial(_critic_kernel, mxu_dtype=mxu_dtype),
        out_shape=jax.ShapeDtypeStruct((grid_n, 1, tb), jnp.float32),
        grid_spec=pltpu.PrefetchScalarGridSpec(
            num_scalar_prefetch=0,
            grid=(grid_n,),
            in_specs=[
                pl.BlockSpec((tb, input_dims), lambda i: (i, 0)),  # state (tiled)
                pl.BlockSpec((tb, n_actions), lambda i: (i, 0)),   # action (tiled)
                pl.BlockSpec((input_dims, fc1), const),            # w1
                pl.BlockSpec((3, fc1), const),                     # b1/g1/be1
                pl.BlockSpec((fc1, fc2), const),                   # w2
                pl.BlockSpec((3, fc2), const),                     # b2/g2/be2
                pl.BlockSpec((n_actions, fc2), const),             # wa
                pl.BlockSpec((3, fc2), const),                     # ba/wq/bq
            ],
            out_specs=pl.BlockSpec((1, 1, tb), lambda i: (i, 0, 0)),
        ),
        compiler_params=pltpu.CompilerParams(
            dimension_semantics=("parallel",)),
        cost_estimate=pl.CostEstimate(
            flops=flops, transcendentals=2 * b_total,
            bytes_accessed=bytes_accessed),
    )(state, action, w1, p1, w2, p2, wa, head)

    # (grid_n, 1, tb) -> (grid_n*tb, 1) -> valid rows
    return q3.reshape(grid_n * tb, 1)[:B]


def init_params(key, input_dims, fc1_dims, fc2_dims, n_actions):
    """Deterministic init mirroring the PyTorch __init__ (uniform ranges)."""
    ks = jax.random.split(key, 8)
    f1 = 1.0 / jnp.sqrt(fc1_dims)      # fc1.weight.size(0) == fc1_dims
    f2 = 1.0 / jnp.sqrt(fc2_dims)      # fc2.weight.size(0) == fc2_dims
    fa = 1.0 / jnp.sqrt(n_actions)     # nn.Linear default bound for action_value
    f3 = 0.003
    u = lambda k, shape, b: jax.random.uniform(k, shape, jnp.float32, -b, b)
    return {
        # weights stored as [in, out] (transposed w.r.t. torch's [out, in])
        "w1": u(ks[0], (input_dims, fc1_dims), f1),
        "b1": u(ks[1], (1, fc1_dims), f1),
        "g1": jnp.ones((1, fc1_dims), jnp.float32),
        "be1": jnp.zeros((1, fc1_dims), jnp.float32),
        "w2": u(ks[2], (fc1_dims, fc2_dims), f2),
        "b2": u(ks[3], (1, fc2_dims), f2),
        "g2": jnp.ones((1, fc2_dims), jnp.float32),
        "be2": jnp.zeros((1, fc2_dims), jnp.float32),
        "wa": u(ks[4], (n_actions, fc2_dims), fa),
        "ba": u(ks[5], (1, fc2_dims), fa),
        "wq": u(ks[6], (1, fc2_dims), f3),   # stored as a lane row [1, fc2]
        "bq": u(ks[7], (1, 1), f3),
    }


def critic_ref(state, action, p):
    """Pure-JAX reference with identical semantics (for correctness check)."""
    x = state @ p["w1"] + p["b1"]
    x = _layernorm(x, p["g1"], p["be1"])
    x = jnp.maximum(x, 0.0)
    x = x @ p["w2"] + p["b2"]
    x = _layernorm(x, p["g2"], p["be2"])
    x = jnp.maximum(x, 0.0)
    a = jnp.maximum(action @ p["wa"] + p["ba"], 0.0)
    sav = jnp.maximum(x + a, 0.0)
    return sav @ p["wq"].T + p["bq"]


if __name__ == "__main__":
    key = jax.random.PRNGKey(0)
    k_state, k_action, k_params = jax.random.split(key, 3)

    # Small shapes consistent with the module (Pendulum-like, modestly scaled).
    batch, input_dims, fc1_dims, fc2_dims, n_actions = 8, 8, 64, 32, 4

    state = jax.random.normal(k_state, (batch, input_dims), jnp.float32)
    action = jax.random.normal(k_action, (batch, n_actions), jnp.float32)
    params = init_params(k_params, input_dims, fc1_dims, fc2_dims, n_actions)

    q = critic_forward(state, action, params)   # default f32 (torch parity)
    jax.block_until_ready(q)
    assert q.shape == (batch, 1)

    q_ref = critic_ref(state, action, params)
    assert jnp.allclose(q, q_ref, rtol=1e-4, atol=1e-4), "mismatch vs reference"

    print("KERNEL_OK")
</pallas_src>

<mosaic_0001>
module attributes {stable_mosaic.version = 11 : i64} {
  func.func @_critic_kernel(%arg0: i32, %arg1: memref<8x8xf32, #tpu.memory_space<vmem>>, %arg2: memref<8x4xf32, #tpu.memory_space<vmem>>, %arg3: memref<8x64xf32, #tpu.memory_space<vmem>>, %arg4: memref<3x64xf32, #tpu.memory_space<vmem>>, %arg5: memref<64x32xf32, #tpu.memory_space<vmem>>, %arg6: memref<3x32xf32, #tpu.memory_space<vmem>>, %arg7: memref<4x32xf32, #tpu.memory_space<vmem>>, %arg8: memref<3x32xf32, #tpu.memory_space<vmem>>, %arg9: memref<1x1x8xf32, #tpu.memory_space<vmem>>) attributes {dimension_semantics = [#tpu.dimension_semantics<parallel>], iteration_bounds = array<i64: 1>, scalar_prefetch = 0 : i64, scratch_operands = 0 : i64, tpu.core_type = #tpu.core_type<tc>, window_params = [{transform_indices = @transform_0, window_bounds = array<i64: 8, 8>}, {transform_indices = @transform_1, window_bounds = array<i64: 8, 4>}, {pipeline_mode = #tpu.pipeline_mode<synchronous>, transform_indices = @transform_2, window_bounds = array<i64: 8, 64>}, {pipeline_mode = #tpu.pipeline_mode<synchronous>, transform_indices = @transform_3, window_bounds = array<i64: 3, 64>}, {pipeline_mode = #tpu.pipeline_mode<synchronous>, transform_indices = @transform_4, window_bounds = array<i64: 64, 32>}, {pipeline_mode = #tpu.pipeline_mode<synchronous>, transform_indices = @transform_5, window_bounds = array<i64: 3, 32>}, {pipeline_mode = #tpu.pipeline_mode<synchronous>, transform_indices = @transform_6, window_bounds = array<i64: 4, 32>}, {pipeline_mode = #tpu.pipeline_mode<synchronous>, transform_indices = @transform_7, window_bounds = array<i64: 3, 32>}, {transform_indices = @transform_8, window_bounds = array<i64: 1, 1, 8>}]} {
    %c0 = arith.constant 0 : index
    %c0_0 = arith.constant 0 : index
    %0 = vector.load %arg1[%c0, %c0_0] : memref<8x8xf32, #tpu.memory_space<vmem>>, vector<8x8xf32>
    %c0_1 = arith.constant 0 : index
    %c0_2 = arith.constant 0 : index
    %1 = vector.load %arg3[%c0_1, %c0_2] : memref<8x64xf32, #tpu.memory_space<vmem>>, vector<8x64xf32>
    %cst = arith.constant dense<0.000000e+00> : vector<8x64xf32>
    %2 = tpu.matmul %0, %1, %cst {dimension_numbers = #tpu.dot_dimension_numbers<[1], [0], [0], [1], [0, 0, 1, 1], [], []>} : vector<8x8xf32>, vector<8x64xf32>, vector<8x64xf32> -> vector<8x64xf32>
    %c0_3 = arith.constant 0 : index
    %c0_4 = arith.constant 0 : index
    %3 = vector.load %arg4[%c0_3, %c0_4] : memref<3x64xf32, #tpu.memory_space<vmem>>, vector<1x64xf32>
    %4 = vector.broadcast %3 : vector<1x64xf32> to vector<8x64xf32>
    %5 = arith.addf %2, %4 : vector<8x64xf32>
    %c1 = arith.constant 1 : index
    %c0_5 = arith.constant 0 : index
    %6 = vector.load %arg4[%c1, %c0_5] : memref<3x64xf32, #tpu.memory_space<vmem>>, vector<1x64xf32>
    %c2 = arith.constant 2 : index
    %c0_6 = arith.constant 0 : index
    %7 = vector.load %arg4[%c2, %c0_6] : memref<3x64xf32, #tpu.memory_space<vmem>>, vector<1x64xf32>
    %cst_7 = arith.constant dense<0.000000e+00> : vector<8xf32>
    %8 = vector.multi_reduction <add>, %5, %cst_7 [1] : vector<8x64xf32> to vector<8xf32>
    %9 = vector.shape_cast %8 : vector<8xf32> to vector<8x1xf32>
    %cst_8 = arith.constant 6.400000e+01 : f32
    %10 = vector.broadcast %cst_8 : f32 to vector<8x1xf32>
    %11 = arith.divf %9, %10 : vector<8x1xf32>
    %12 = vector.broadcast %11 : vector<8x1xf32> to vector<8x64xf32>
    %13 = arith.subf %5, %12 : vector<8x64xf32>
    %14 = arith.mulf %13, %13 : vector<8x64xf32>
    %cst_9 = arith.constant dense<0.000000e+00> : vector<8xf32>
    %15 = vector.multi_reduction <add>, %14, %cst_9 [1] : vector<8x64xf32> to vector<8xf32>
    %16 = vector.shape_cast %15 : vector<8xf32> to vector<8x1xf32>
    %cst_10 = arith.constant 6.400000e+01 : f32
    %17 = vector.broadcast %cst_10 : f32 to vector<8x1xf32>
    %18 = arith.divf %16, %17 : vector<8x1xf32>
    %cst_11 = arith.constant 9.99999974E-6 : f32
    %19 = vector.broadcast %cst_11 : f32 to vector<8x1xf32>
    %20 = arith.addf %18, %19 : vector<8x1xf32>
    %21 = math.rsqrt %20 : vector<8x1xf32>
    %22 = vector.broadcast %21 : vector<8x1xf32> to vector<8x64xf32>
    %23 = arith.mulf %13, %22 : vector<8x64xf32>
    %24 = vector.broadcast %6 : vector<1x64xf32> to vector<8x64xf32>
    %25 = arith.mulf %23, %24 : vector<8x64xf32>
    %26 = vector.broadcast %7 : vector<1x64xf32> to vector<8x64xf32>
    %27 = arith.addf %25, %26 : vector<8x64xf32>
    %cst_12 = arith.constant 0.000000e+00 : f32
    %28 = vector.broadcast %cst_12 : f32 to vector<8x64xf32>
    %29 = arith.maximumf %27, %28 : vector<8x64xf32>
    %c0_13 = arith.constant 0 : index
    %c0_14 = arith.constant 0 : index
    %30 = vector.load %arg5[%c0_13, %c0_14] : memref<64x32xf32, #tpu.memory_space<vmem>>, vector<64x32xf32>
    %cst_15 = arith.constant dense<0.000000e+00> : vector<8x32xf32>
    %31 = tpu.matmul %29, %30, %cst_15 {dimension_numbers = #tpu.dot_dimension_numbers<[1], [0], [0], [1], [0, 0, 1, 1], [], []>} : vector<8x64xf32>, vector<64x32xf32>, vector<8x32xf32> -> vector<8x32xf32>
    %c0_16 = arith.constant 0 : index
    %c0_17 = arith.constant 0 : index
    %32 = vector.load %arg6[%c0_16, %c0_17] : memref<3x32xf32, #tpu.memory_space<vmem>>, vector<1x32xf32>
    %33 = vector.broadcast %32 : vector<1x32xf32> to vector<8x32xf32>
    %34 = arith.addf %31, %33 : vector<8x32xf32>
    %c1_18 = arith.constant 1 : index
    %c0_19 = arith.constant 0 : index
    %35 = vector.load %arg6[%c1_18, %c0_19] : memref<3x32xf32, #tpu.memory_space<vmem>>, vector<1x32xf32>
    %c2_20 = arith.constant 2 : index
    %c0_21 = arith.constant 0 : index
    %36 = vector.load %arg6[%c2_20, %c0_21] : memref<3x32xf32, #tpu.memory_space<vmem>>, vector<1x32xf32>
    %cst_22 = arith.constant dense<0.000000e+00> : vector<8xf32>
    %37 = vector.multi_reduction <add>, %34, %cst_22 [1] : vector<8x32xf32> to vector<8xf32>
    %38 = vector.shape_cast %37 : vector<8xf32> to vector<8x1xf32>
    %cst_23 = arith.constant 3.200000e+01 : f32
    %39 = vector.broadcast %cst_23 : f32 to vector<8x1xf32>
    %40 = arith.divf %38, %39 : vector<8x1xf32>
    %41 = vector.broadcast %40 : vector<8x1xf32> to vector<8x32xf32>
    %42 = arith.subf %34, %41 : vector<8x32xf32>
    %43 = arith.mulf %42, %42 : vector<8x32xf32>
    %cst_24 = arith.constant dense<0.000000e+00> : vector<8xf32>
    %44 = vector.multi_reduction <add>, %43, %cst_24 [1] : vector<8x32xf32> to vector<8xf32>
    %45 = vector.shape_cast %44 : vector<8xf32> to vector<8x1xf32>
    %cst_25 = arith.constant 3.200000e+01 : f32
    %46 = vector.broadcast %cst_25 : f32 to vector<8x1xf32>
    %47 = arith.divf %45, %46 : vector<8x1xf32>
    %cst_26 = arith.constant 9.99999974E-6 : f32
    %48 = vector.broadcast %cst_26 : f32 to vector<8x1xf32>
    %49 = arith.addf %47, %48 : vector<8x1xf32>
    %50 = math.rsqrt %49 : vector<8x1xf32>
    %51 = vector.broadcast %50 : vector<8x1xf32> to vector<8x32xf32>
    %52 = arith.mulf %42, %51 : vector<8x32xf32>
    %53 = vector.broadcast %35 : vector<1x32xf32> to vector<8x32xf32>
    %54 = arith.mulf %52, %53 : vector<8x32xf32>
    %55 = vector.broadcast %36 : vector<1x32xf32> to vector<8x32xf32>
    %56 = arith.addf %54, %55 : vector<8x32xf32>
    %cst_27 = arith.constant 0.000000e+00 : f32
    %57 = vector.broadcast %cst_27 : f32 to vector<8x32xf32>
    %58 = arith.maximumf %56, %57 : vector<8x32xf32>
    %c0_28 = arith.constant 0 : index
    %c0_29 = arith.constant 0 : index
    %59 = vector.load %arg2[%c0_28, %c0_29] : memref<8x4xf32, #tpu.memory_space<vmem>>, vector<8x4xf32>
    %c0_30 = arith.constant 0 : index
    %c0_31 = arith.constant 0 : index
    %60 = vector.load %arg7[%c0_30, %c0_31] : memref<4x32xf32, #tpu.memory_space<vmem>>, vector<4x32xf32>
    %cst_32 = arith.constant dense<0.000000e+00> : vector<8x32xf32>
    %61 = tpu.matmul %59, %60, %cst_32 {dimension_numbers = #tpu.dot_dimension_numbers<[1], [0], [0], [1], [0, 0, 1, 1], [], []>} : vector<8x4xf32>, vector<4x32xf32>, vector<8x32xf32> -> vector<8x32xf32>
    %c0_33 = arith.constant 0 : index
    %c0_34 = arith.constant 0 : index
    %62 = vector.load %arg8[%c0_33, %c0_34] : memref<3x32xf32, #tpu.memory_space<vmem>>, vector<1x32xf32>
    %63 = vector.broadcast %62 : vector<1x32xf32> to vector<8x32xf32>
    %64 = arith.addf %61, %63 : vector<8x32xf32>
    %cst_35 = arith.constant 0.000000e+00 : f32
    %65 = vector.broadcast %cst_35 : f32 to vector<8x32xf32>
    %66 = arith.maximumf %64, %65 : vector<8x32xf32>
    %67 = arith.addf %58, %66 : vector<8x32xf32>
    %cst_36 = arith.constant 0.000000e+00 : f32
    %68 = vector.broadcast %cst_36 : f32 to vector<8x32xf32>
    %69 = arith.maximumf %67, %68 : vector<8x32xf32>
    %c1_37 = arith.constant 1 : index
    %c0_38 = arith.constant 0 : index
    %70 = vector.load %arg8[%c1_37, %c0_38] : memref<3x32xf32, #tpu.memory_space<vmem>>, vector<1x32xf32>
    %cst_39 = arith.constant dense<0.000000e+00> : vector<1x8xf32>
    %71 = tpu.matmul %70, %69, %cst_39 {dimension_numbers = #tpu.dot_dimension_numbers<[1], [1], [0], [0], [0, 0, 1, 0], [], []>} : vector<1x32xf32>, vector<8x32xf32>, vector<1x8xf32> -> vector<1x8xf32>
    %c2_40 = arith.constant 2 : index
    %c0_41 = arith.constant 0 : index
    %72 = vector.load %arg8[%c2_40, %c0_41] : memref<3x32xf32, #tpu.memory_space<vmem>>, vector<1x1xf32>
    %73 = vector.broadcast %72 : vector<1x1xf32> to vector<1x8xf32>
    %74 = arith.addf %71, %73 : vector<1x8xf32>
    %75 = vector.shape_cast %74 : vector<1x8xf32> to vector<1x1x8xf32>
    %c0_42 = arith.constant 0 : index
    %c0_43 = arith.constant 0 : index
    %c0_44 = arith.constant 0 : index
    %76 = vector.load %arg9[%c0_42, %c0_43, %c0_44] : memref<1x1x8xf32, #tpu.memory_space<vmem>>, vector<1x1x8xf32>
    tpu.vector_store %arg9[%c0_42, %c0_43, %c0_44], %75 {strides = array<i32>} : memref<1x1x8xf32, #tpu.memory_space<vmem>>, vector<1x1x8xf32>,
    return
  }
  func.func @transform_0(%arg0: i32) -> (i32, i32) {
    %c0_i32 = arith.constant 0 : i32
    %c0_i32_0 = arith.constant 0 : i32
    return %arg0, %c0_i32 : i32, i32
  }
  func.func @transform_1(%arg0: i32) -> (i32, i32) {
    %c0_i32 = arith.constant 0 : i32
    %c0_i32_0 = arith.constant 0 : i32
    return %arg0, %c0_i32 : i32, i32
  }
  func.func @transform_2(%arg0: i32) -> (i32, i32) {
    %c0_i32 = arith.constant 0 : i32
    %c0_i32_0 = arith.constant 0 : i32
    %c0_i32_1 = arith.constant 0 : i32
    return %c0_i32, %c0_i32_0 : i32, i32
  }
  func.func @transform_3(%arg0: i32) -> (i32, i32) {
    %c0_i32 = arith.constant 0 : i32
    %c0_i32_0 = arith.constant 0 : i32
    %c0_i32_1 = arith.constant 0 : i32
    return %c0_i32, %c0_i32_0 : i32, i32
  }
  func.func @transform_4(%arg0: i32) -> (i32, i32) {
    %c0_i32 = arith.constant 0 : i32
    %c0_i32_0 = arith.constant 0 : i32
    %c0_i32_1 = arith.constant 0 : i32
    return %c0_i32, %c0_i32_0 : i32, i32
  }
  func.func @transform_5(%arg0: i32) -> (i32, i32) {
    %c0_i32 = arith.constant 0 : i32
    %c0_i32_0 = arith.constant 0 : i32
    %c0_i32_1 = arith.constant 0 : i32
    return %c0_i32, %c0_i32_0 : i32, i32
  }
  func.func @transform_6(%arg0: i32) -> (i32, i32) {
    %c0_i32 = arith.constant 0 : i32
    %c0_i32_0 = arith.constant 0 : i32
    %c0_i32_1 = arith.constant 0 : i32
    return %c0_i32, %c0_i32_0 : i32, i32
  }
  func.func @transform_7(%arg0: i32) -> (i32, i32) {
    %c0_i32 = arith.constant 0 : i32
    %c0_i32_0 = arith.constant 0 : i32
    %c0_i32_1 = arith.constant 0 : i32
    return %c0_i32, %c0_i32_0 : i32, i32
  }
  func.func @transform_8(%arg0: i32) -> (i32, i32, i32) {
    %c0_i32 = arith.constant 0 : i32
    %c0_i32_0 = arith.constant 0 : i32
    %c0_i32_1 = arith.constant 0 : i32
    return %arg0, %c0_i32, %c0_i32_0 : i32, i32, i32
  }
}

</mosaic_0001>

<llo_original>
// kernel: tpu_custom_call.1
$region0: #{tpu_custom_call.1}
  #allocation0 [shape = 'u32[]', space=smem, size = 0x4, offset = 0x4, fixed_abs, tag = 'smem constant byte address 0x4 - core index']
  #allocation1 [shape = 'u32[144,128]{1,0:T(1,128)}', space=vmem, size = 0x12000, scoped, tag = 'internal scratch']
  %s0 = inlined_call_operand.vmem [shape: f32[8,8], index: 0, kind: input, shape index: {}]
  %s1 = inlined_call_operand.vmem [shape: f32[8,4], index: 1, kind: input, shape index: {}]
  %s2 = inlined_call_operand.vmem [shape: f32[8,64], index: 2, kind: input, shape index: {}]
  %s3 = inlined_call_operand.vmem [shape: f32[3,64], index: 3, kind: input, shape index: {}]
  %s4 = inlined_call_operand.vmem [shape: f32[64,32], index: 4, kind: input, shape index: {}]
  %s5 = inlined_call_operand.vmem [shape: f32[3,32], index: 5, kind: input, shape index: {}]
  %s6 = inlined_call_operand.vmem [shape: f32[4,32], index: 6, kind: input, shape index: {}]
  %s7 = inlined_call_operand.vmem [shape: f32[3,32], index: 7, kind: input, shape index: {}]
  %s8 = inlined_call_operand.hbm [shape: f32[1,1,8], index: 8, kind: output, shape index: {}]
  %s9 = sld [smem:[#allocation0]]
  $region42: #{tpu_custom_call.1} parent=0
    _
  %s11 = ssub.s32 1, %s9
  %s12 = scalar_select 0, %s11, %s9
  $region1: #{tpu_custom_call.1} parent=0
    #allocation2 [shape = 'u8[512]{0}', space=vmem, size = 0x400, scoped, tag = 'output window, operand 0, single buffered']
    #allocation3 [shape = 's32[1]{0}', space=sflag, size = 0x4, scoped, tag = 'scoped memory for tpu_custom_call.1']
    %13 = vsyncpa [#allocation3], 0
    // Predicated region
    $region2: #{tpu_custom_call.1} parent=1 // pred_check
      _
    $region3: #{tpu_custom_call.1} parent=1 // pred_check_branch
      %15 = sbr.rel (0) target = $region5
    $region4: #{tpu_custom_call.1} parent=1 // pred_region
      _
    $region5: #{tpu_custom_call.1} parent=1 // pred_fallthru
      _
    // Predicated region
    $region6: #{tpu_custom_call.1} parent=1 // pred_check
      _
    $region7: #{tpu_custom_call.1} parent=1 // pred_check_branch
      %17 = sbr.rel (0) target = $region9
    $region8: #{tpu_custom_call.1} parent=1 // pred_region
      _
    $region9: #{tpu_custom_call.1} parent=1 // pred_fallthru
      _
    // Predicated region
    $region10: #{tpu_custom_call.1} parent=1 // pred_check
      _
    $region11: #{tpu_custom_call.1} parent=1 // pred_check_branch
      %19 = sbr.rel (0) target = $region13
    $region12: #{tpu_custom_call.1} parent=1 // pred_region
      _
    $region13: #{tpu_custom_call.1} parent=1 // pred_fallthru
      _
    // Predicated region
    $region14: #{tpu_custom_call.1} parent=1 // pred_check
      _
    $region15: #{tpu_custom_call.1} parent=1 // pred_check_branch
      %21 = sbr.rel (0) target = $region17
    $region16: #{tpu_custom_call.1} parent=1 // pred_region
      _
    $region17: #{tpu_custom_call.1} parent=1 // pred_fallthru
      _
    // Predicated region
    $region18: #{tpu_custom_call.1} parent=1 // pred_check
      _
    $region19: #{tpu_custom_call.1} parent=1 // pred_check_branch
      %23 = sbr.rel (0) target = $region21
    $region20: #{tpu_custom_call.1} parent=1 // pred_region
      _
    $region21: #{tpu_custom_call.1} parent=1 // pred_fallthru
      _
    // Predicated region
    $region22: #{tpu_custom_call.1} parent=1 // pred_check
      _
    $region23: #{tpu_custom_call.1} parent=1 // pred_check_branch
      %25 = sbr.rel (0) target = $region25
    $region24: #{tpu_custom_call.1} parent=1 // pred_region
      _
    $region25: #{tpu_custom_call.1} parent=1 // pred_fallthru
      _
    // Predicated region
    $region26: #{tpu_custom_call.1} parent=1 // pred_check
      _
    $region27: #{tpu_custom_call.1} parent=1 // pred_check_branch
      %27 = sbr.rel (0) target = $region29
    $region28: #{tpu_custom_call.1} parent=1 // pred_region
      _
    $region29: #{tpu_custom_call.1} parent=1 // pred_fallthru
      _
    // Predicated region
    $region30: #{tpu_custom_call.1} parent=1 // pred_check
      _
    $region31: #{tpu_custom_call.1} parent=1 // pred_check_branch
      %29 = sbr.rel (0) target = $region33
    $region32: #{tpu_custom_call.1} parent=1 // pred_region
      _
    $region33: #{tpu_custom_call.1} parent=1 // pred_fallthru
      _
    %v30 = vld [vmem:[%s0] sm:$0xff]
    %v31 = vld [vmem:[%s2] sm:$0xff]
    %v32 = vld [vmem:[%s3] sm:$0x1]
    %v33 = vlaneseq
    %v34 = vshrl.u32 %v33, 7
    %v35 = vsub.s32 0, %v34
    %v36 = vrot.slane %v32, %v35
    %vm37 = vcmask 64512
    %v39 = vsel %vm37, %v30, 0
    %41 = vmatprep.subr.mxu0 0.0
    %42 = vmatpush1.msra.mxu0 %v31
    %43 = vmatprep.subr.mxu0 0.0
    %44 = vmatpush1.msra.mxu0 0.0
    %45 = vmatprep.subr.mxu0 0.0
    %46 = vmatpush1.msra.mxu0 0.0
    %47 = vmatprep.subr.mxu0 0.0
    %48 = vmatpush1.msra.mxu0 0.0
    %49 = vmatprep.subr.mxu0 0.0
    %50 = vmatpush1.msra.mxu0 0.0
    %51 = vmatprep.subr.mxu0 0.0
    %52 = vmatpush1.msra.mxu0 0.0
    %53 = vmatprep.subr.mxu0 0.0
    %54 = vmatpush1.msra.mxu0 0.0
    %55 = vmatprep.subr.mxu0 0.0
    %56 = vmatpush1.msra.mxu0 0.0
    %57 = vmatprep.subr.mxu0 0.0
    %58 = vmatpush1.msra.mxu0 0.0
    %59 = vmatprep.subr.mxu0 0.0
    %60 = vmatpush1.msra.mxu0 0.0
    %61 = vmatprep.subr.mxu0 0.0
    %62 = vmatpush1.msra.mxu0 0.0
    %63 = vmatprep.subr.mxu0 0.0
    %64 = vmatpush1.msra.mxu0 0.0
    %65 = vmatprep.subr.mxu0 0.0
    %66 = vmatpush1.msra.mxu0 0.0
    %67 = vmatprep.subr.mxu0 0.0
    %68 = vmatpush1.msra.mxu0 0.0
    %69 = vmatprep.subr.mxu0 0.0
    %70 = vmatpush1.msra.mxu0 0.0
    %71 = vmatprep.subr.mxu0 0.0
    %72 = vmatpush1.msra.mxu0 0.0
    %73 = vmatprep.subr.mxu0 0.0
    %74 = vmatpush1.msra.mxu0 0.0
    %75 = vmatprep.subr.mxu0 0.0
    %76 = vmatpush1.msra.mxu0 0.0
    %77 = vmatprep.subr.mxu0 0.0
    %78 = vmatpush1.msra.mxu0 0.0
    %79 = vmatprep.subr.mxu0 0.0
    %80 = vmatpush1.msra.mxu0 0.0
    %81 = vmatprep.subr.mxu0 0.0
    %82 = vmatpush1.msra.mxu0 0.0
    %83 = vmatprep.subr.mxu0 0.0
    %84 = vmatpush1.msra.mxu0 0.0
    %85 = vmatprep.subr.mxu0 0.0
    %86 = vmatpush1.msra.mxu0 0.0
    %87 = vmatprep.subr.mxu0 0.0
    %88 = vmatpush1.msra.mxu0 0.0
    %89 = vmatprep.subr.mxu0 0.0
    %90 = vmatpush1.msra.mxu0 0.0
    %91 = vmatprep.subr.mxu0 0.0
    %92 = vmatpush1.msra.mxu0 0.0
    %93 = vmatprep.subr.mxu0 0.0
    %94 = vmatpush1.msra.mxu0 0.0
    %95 = vmatprep.subr.mxu0 0.0
    %96 = vmatpush1.msra.mxu0 0.0
    %97 = vmatprep.subr.mxu0 0.0
    %98 = vmatpush1.msra.mxu0 0.0
    %99 = vmatprep.subr.mxu0 0.0
    %100 = vmatpush1.msra.mxu0 0.0
    %101 = vmatprep.subr.mxu0 0.0
    %102 = vmatpush1.msra.mxu0 0.0
    %103 = vmatprep.subr.mxu0 0.0
    %104 = vmatpush1.msra.mxu0 0.0
    %105 = vmatprep.mubr.f32.mxu0 0.0
    %106 = vmatmul.mubr.f32.gmra.mrb[0].mxu0 %v39
    %v107 = vpop.f32.mrb[0].mxu0
    %v108 = vadd.f32 %v36, %v107
    %v109 = vpop.f32.mrb[0].mxu0
    %110 = vdwg.mxu0
    %v111 = vld [vmem:[%s3 + $0x1] sm:$0x1]
    %v112 = vld [vmem:[%s3 + $0x2] sm:$0x1]
    %vm113 = vcmask 523264
    %v114 = vsel %vm113, %v108, 0.0
    %115 = vadd.xlane.f32.xlu0 %v114
    %v116 = vpop.xlane.xlu0 %115
    %v117 = vrcp.pop 64.0
    %v118 = vmul.f32 %v116, %v117
    %v119 = vsub.f32 %v108, %v118
    %v120 = vmul.f32 %v119, %v119
    %v121 = vsel %vm113, %v120, 0.0
    %122 = vadd.xlane.f32.xlu0 %v121
    %v123 = vpop.xlane.xlu0 %122
    %v124 = vmul.f32 %v123, %v117
    %v125 = vadd.f32 %v124, 1e-05
    %v126 = vrsqrt.pop %v125
    %v127 = vmul.f32 %v119, %v126
    %v128 = vlaneseq
    %v129 = vshrl.u32 %v128, 7
    %v130 = vsub.s32 0, %v129
    %v131 = vrot.slane %v111, %v130
    %v132 = vmul.f32 %v127, %v131
    %v133 = vlaneseq
    %v134 = vshrl.u32 %v133, 7
    %v135 = vsub.s32 0, %v134
    %v136 = vrot.slane %v112, %v135
    %v137 = vadd.f32 %v132, %v136
    %v138 = vmax.f32 %v137, 0.0
    %v139 = vld [vmem:[%s4] sm:$0xff]
    %v140 = vld [vmem:[%s4 + $0x8] sm:$0xff]
    %v141 = vld [vmem:[%s4 + $0x10] sm:$0xff]
    %v142 = vld [vmem:[%s4 + $0x18] sm:$0xff]
    %v143 = vld [vmem:[%s4 + $0x20] sm:$0xff]
    %v144 = vld [vmem:[%s4 + $0x28] sm:$0xff]
    %v145 = vld [vmem:[%s4 + $0x30] sm:$0xff]
    %v146 = vld [vmem:[%s4 + $0x38] sm:$0xff]
    %v147 = vld [vmem:[%s5] sm:$0x1]
    %v148 = vlaneseq
    %v149 = vshrl.u32 %v148, 7
    %v150 = vsub.s32 0, %v149
    %v151 = vrot.slane %v147, %v150
    %v153 = vsel %vm113, %v138, 0
    %155 = vmatprep.subr.mxu0 0.0
    %156 = vmatpush1.msra.mxu0 %v139
    %157 = vmatprep.subr.mxu0 0.0
    %158 = vmatpush1.msra.mxu0 %v140
    %159 = vmatprep.subr.mxu0 0.0
    %160 = vmatpush1.msra.mxu0 %v141
    %161 = vmatprep.subr.mxu0 0.0
    %162 = vmatpush1.msra.mxu0 %v142
    %163 = vmatprep.subr.mxu0 0.0
    %164 = vmatpush1.msra.mxu0 %v143
    %165 = vmatprep.subr.mxu0 0.0
    %166 = vmatpush1.msra.mxu0 %v144
    %167 = vmatprep.subr.mxu0 0.0
    %168 = vmatpush1.msra.mxu0 %v145
    %169 = vmatprep.subr.mxu0 0.0
    %170 = vmatpush1.msra.mxu0 %v146
    %171 = vmatprep.subr.mxu0 0.0
    %172 = vmatpush1.msra.mxu0 0.0
    %173 = vmatprep.subr.mxu0 0.0
    %174 = vmatpush1.msra.mxu0 0.0
    %175 = vmatprep.subr.mxu0 0.0
    %176 = vmatpush1.msra.mxu0 0.0
    %177 = vmatprep.subr.mxu0 0.0
    %178 = vmatpush1.msra.mxu0 0.0
    %179 = vmatprep.subr.mxu0 0.0
    %180 = vmatpush1.msra.mxu0 0.0
    %181 = vmatprep.subr.mxu0 0.0
    %182 = vmatpush1.msra.mxu0 0.0
    %183 = vmatprep.subr.mxu0 0.0
    %184 = vmatpush1.msra.mxu0 0.0
    %185 = vmatprep.subr.mxu0 0.0
    %186 = vmatpush1.msra.mxu0 0.0
    %187 = vmatprep.subr.mxu0 0.0
    %188 = vmatpush1.msra.mxu0 0.0
    %189 = vmatprep.subr.mxu0 0.0
    %190 = vmatpush1.msra.mxu0 0.0
    %191 = vmatprep.subr.mxu0 0.0
    %192 = vmatpush1.msra.mxu0 0.0
    %193 = vmatprep.subr.mxu0 0.0
    %194 = vmatpush1.msra.mxu0 0.0
    %195 = vmatprep.subr.mxu0 0.0
    %196 = vmatpush1.msra.mxu0 0.0
    %197 = vmatprep.subr.mxu0 0.0
    %198 = vmatpush1.msra.mxu0 0.0
    %199 = vmatprep.subr.mxu0 0.0
    %200 = vmatpush1.msra.mxu0 0.0
    %201 = vmatprep.subr.mxu0 0.0
    %202 = vmatpush1.msra.mxu0 0.0
    %203 = vmatprep.subr.mxu0 0.0
    %204 = vmatpush1.msra.mxu0 0.0
    %205 = vmatprep.subr.mxu0 0.0
    %206 = vmatpush1.msra.mxu0 0.0
    %207 = vmatprep.subr.mxu0 0.0
    %208 = vmatpush1.msra.mxu0 0.0
    %209 = vmatprep.subr.mxu0 0.0
    %210 = vmatpush1.msra.mxu0 0.0
    %211 = vmatprep.subr.mxu0 0.0
    %212 = vmatpush1.msra.mxu0 0.0
    %213 = vmatprep.subr.mxu0 0.0
    %214 = vmatpush1.msra.mxu0 0.0
    %215 = vmatprep.subr.mxu0 0.0
    %216 = vmatpush1.msra.mxu0 0.0
    %217 = vmatprep.subr.mxu0 0.0
    %218 = vmatpush1.msra.mxu0 0.0
    %219 = vmatprep.mubr.f32.mxu0 0.0
    %220 = vmatmul.mubr.f32.gmra.mrb[0].mxu0 %v153
    %v221 = vpop.f32.mrb[0].mxu0
    %v222 = vadd.f32 %v151, %v221
    %v223 = vpop.f32.mrb[0].mxu0
    %224 = vdwg.mxu0
    %v225 = vld [vmem:[%s5 + $0x1] sm:$0x1]
    %v226 = vld [vmem:[%s5 + $0x2] sm:$0x1]
    %vm227 = vcmask 261120
    %v228 = vsel %vm227, %v222, 0.0
    %229 = vadd.xlane.f32.xlu0 %v228
    %v230 = vpop.xlane.xlu0 %229
    %v231 = vrcp.pop 32.0
    %v232 = vmul.f32 %v230, %v231
    %v233 = vsub.f32 %v222, %v232
    %v234 = vmul.f32 %v233, %v233
    %v235 = vsel %vm227, %v234, 0.0
    %236 = vadd.xlane.f32.xlu0 %v235
    %v237 = vpop.xlane.xlu0 %236
    %v238 = vmul.f32 %v237, %v231
    %v239 = vadd.f32 %v238, 1e-05
    %v240 = vrsqrt.pop %v239
    %v241 = vmul.f32 %v233, %v240
    %v242 = vlaneseq
    %v243 = vshrl.u32 %v242, 7
    %v244 = vsub.s32 0, %v243
    %v245 = vrot.slane %v225, %v244
    %v246 = vmul.f32 %v241, %v245
    %v247 = vlaneseq
    %v248 = vshrl.u32 %v247, 7
    %v249 = vsub.s32 0, %v248
    %v250 = vrot.slane %v226, %v249
    %v251 = vadd.f32 %v246, %v250
    %v252 = vmax.f32 %v251, 0.0
    %v253 = vld [vmem:[%s1] sm:$0xff]
    %v254 = vld [vmem:[%s6] sm:$0xf]
    %v255 = vld [vmem:[%s7] sm:$0x1]
    %v256 = vlaneseq
    %v257 = vshrl.u32 %v256, 7
    %v258 = vsub.s32 0, %v257
    %v259 = vrot.slane %v255, %v258
    %vm260 = vcmask 31744
    %v262 = vsel %vm260, %v253, 0
    %vm264 = vcmask 1043456
    %v266 = vsel %vm264, %v254, 0
    %268 = vmatprep.subr.mxu0 0.0
    %269 = vmatpush1.msra.mxu0 %v266
    %270 = vmatprep.subr.mxu0 0.0
    %271 = vmatpush1.msra.mxu0 0.0
    %272 = vmatprep.subr.mxu0 0.0
    %273 = vmatpush1.msra.mxu0 0.0
    %274 = vmatprep.subr.mxu0 0.0
    %275 = vmatpush1.msra.mxu0 0.0
    %276 = vmatprep.subr.mxu0 0.0
    %277 = vmatpush1.msra.mxu0 0.0
    %278 = vmatprep.subr.mxu0 0.0
    %279 = vmatpush1.msra.mxu0 0.0
    %280 = vmatprep.subr.mxu0 0.0
    %281 = vmatpush1.msra.mxu0 0.0
    %282 = vmatprep.subr.mxu0 0.0
    %283 = vmatpush1.msra.mxu0 0.0
    %284 = vmatprep.subr.mxu0 0.0
    %285 = vmatpush1.msra.mxu0 0.0
    %286 = vmatprep.subr.mxu0 0.0
    %287 = vmatpush1.msra.mxu0 0.0
    %288 = vmatprep.subr.mxu0 0.0
    %289 = vmatpush1.msra.mxu0 0.0
    %290 = vmatprep.subr.mxu0 0.0
    %291 = vmatpush1.msra.mxu0 0.0
    %292 = vmatprep.subr.mxu0 0.0
    %293 = vmatpush1.msra.mxu0 0.0
    %294 = vmatprep.subr.mxu0 0.0
    %295 = vmatpush1.msra.mxu0 0.0
    %296 = vmatprep.subr.mxu0 0.0
    %297 = vmatpush1.msra.mxu0 0.0
    %298 = vmatprep.subr.mxu0 0.0
    %299 = vmatpush1.msra.mxu0 0.0
    %300 = vmatprep.subr.mxu0 0.0
    %301 = vmatpush1.msra.mxu0 0.0
    %302 = vmatprep.subr.mxu0 0.0
    %303 = vmatpush1.msra.mxu0 0.0
    %304 = vmatprep.subr.mxu0 0.0
    %305 = vmatpush1.msra.mxu0 0.0
    %306 = vmatprep.subr.mxu0 0.0
    %307 = vmatpush1.msra.mxu0 0.0
    %308 = vmatprep.subr.mxu0 0.0
    %309 = vmatpush1.msra.mxu0 0.0
    %310 = vmatprep.subr.mxu0 0.0
    %311 = vmatpush1.msra.mxu0 0.0
    %312 = vmatprep.subr.mxu0 0.0
    %313 = vmatpush1.msra.mxu0 0.0
    %314 = vmatprep.subr.mxu0 0.0
    %315 = vmatpush1.msra.mxu0 0.0
    %316 = vmatprep.subr.mxu0 0.0
    %317 = vmatpush1.msra.mxu0 0.0
    %318 = vmatprep.subr.mxu0 0.0
    %319 = vmatpush1.msra.mxu0 0.0
    %320 = vmatprep.subr.mxu0 0.0
    %321 = vmatpush1.msra.mxu0 0.0
    %322 = vmatprep.subr.mxu0 0.0
    %323 = vmatpush1.msra.mxu0 0.0
    %324 = vmatprep.subr.mxu0 0.0
    %325 = vmatpush1.msra.mxu0 0.0
    %326 = vmatprep.subr.mxu0 0.0
    %327 = vmatpush1.msra.mxu0 0.0
    %328 = vmatprep.subr.mxu0 0.0
    %329 = vmatpush1.msra.mxu0 0.0
    %330 = vmatprep.subr.mxu0 0.0
    %331 = vmatpush1.msra.mxu0 0.0
    %332 = vmatprep.mubr.f32.mxu0 0.0
    %333 = vmatmul.mubr.f32.gmra.mrb[0].mxu0 %v262
    %v334 = vpop.f32.mrb[0].mxu0
    %v335 = vadd.f32 %v259, %v334
    %v336 = vpop.f32.mrb[0].mxu0
    %337 = vdwg.mxu0
    %v338 = vmax.f32 %v335, 0.0
    %v339 = vadd.f32 %v252, %v338
    %v340 = vmax.f32 %v339, 0.0
    %v341 = vld [vmem:[%s7 + $0x1] sm:$0x1]
    %v342 = vld [vmem:[%s7 + $0x2] sm:$0x1]
    %344 = vset.pattern.permute.xlu0 0
    %345 = vperm.xlu0 %344, %v342
    %v346 = vpop.permute.xlu0 %345
    %v349 = vsel %vm227, %v341, 0
    %v352 = vsel %vm227, %v340, 0
    %354 = vmatprep.subr.mxu0 0.0
    %355 = vmatpush1.xpose.msra.mxu0 %v352
    %356 = vmatprep.subr.mxu0 0.0
    %357 = vmatpush1.xpose.msra.mxu0 0.0
    %358 = vmatprep.subr.mxu0 0.0
    %359 = vmatpush1.xpose.msra.mxu0 0.0
    %360 = vmatprep.subr.mxu0 0.0
    %361 = vmatpush1.xpose.msra.mxu0 0.0
    %362 = vmatprep.subr.mxu0 0.0
    %363 = vmatpush1.xpose.msra.mxu0 0.0
    %364 = vmatprep.subr.mxu0 0.0
    %365 = vmatpush1.xpose.msra.mxu0 0.0
    %366 = vmatprep.subr.mxu0 0.0
    %367 = vmatpush1.xpose.msra.mxu0 0.0
    %368 = vmatprep.subr.mxu0 0.0
    %369 = vmatpush1.xpose.msra.mxu0 0.0
    %370 = vmatprep.subr.mxu0 0.0
    %371 = vmatpush1.xpose.msra.mxu0 0.0
    %372 = vmatprep.subr.mxu0 0.0
    %373 = vmatpush1.xpose.msra.mxu0 0.0
    %374 = vmatprep.subr.mxu0 0.0
    %375 = vmatpush1.xpose.msra.mxu0 0.0
    %376 = vmatprep.subr.mxu0 0.0
    %377 = vmatpush1.xpose.msra.mxu0 0.0
    %378 = vmatprep.subr.mxu0 0.0
    %379 = vmatpush1.xpose.msra.mxu0 0.0
    %380 = vmatprep.subr.mxu0 0.0
    %381 = vmatpush1.xpose.msra.mxu0 0.0
    %382 = vmatprep.subr.mxu0 0.0
    %383 = vmatpush1.xpose.msra.mxu0 0.0
    %384 = vmatprep.subr.mxu0 0.0
    %385 = vmatpush1.xpose.msra.mxu0 0.0
    %386 = vmatprep.subr.mxu0 0.0
    %387 = vmatpush1.xpose.msra.mxu0 0.0
    %388 = vmatprep.subr.mxu0 0.0
    %389 = vmatpush1.xpose.msra.mxu0 0.0
    %390 = vmatprep.subr.mxu0 0.0
    %391 = vmatpush1.xpose.msra.mxu0 0.0
    %392 = vmatprep.subr.mxu0 0.0
    %393 = vmatpush1.xpose.msra.mxu0 0.0
    %394 = vmatprep.subr.mxu0 0.0
    %395 = vmatpush1.xpose.msra.mxu0 0.0
    %396 = vmatprep.subr.mxu0 0.0
    %397 = vmatpush1.xpose.msra.mxu0 0.0
    %398 = vmatprep.subr.mxu0 0.0
    %399 = vmatpush1.xpose.msra.mxu0 0.0
    %400 = vmatprep.subr.mxu0 0.0
    %401 = vmatpush1.xpose.msra.mxu0 0.0
    %402 = vmatprep.subr.mxu0 0.0
    %403 = vmatpush1.xpose.msra.mxu0 0.0
    %404 = vmatprep.subr.mxu0 0.0
    %405 = vmatpush1.xpose.msra.mxu0 0.0
    %406 = vmatprep.subr.mxu0 0.0
    %407 = vmatpush1.xpose.msra.mxu0 0.0
    %408 = vmatprep.subr.mxu0 0.0
    %409 = vmatpush1.xpose.msra.mxu0 0.0
    %410 = vmatprep.subr.mxu0 0.0
    %411 = vmatpush1.xpose.msra.mxu0 0.0
    %412 = vmatprep.subr.mxu0 0.0
    %413 = vmatpush1.xpose.msra.mxu0 0.0
    %414 = vmatprep.subr.mxu0 0.0
    %415 = vmatpush1.xpose.msra.mxu0 0.0
    %416 = vmatprep.subr.mxu0 0.0
    %417 = vmatpush1.xpose.msra.mxu0 0.0
    %418 = vmatprep.mubr.f32.mxu0 0.0
    %419 = vmatmul.mubr.f32.gmra.mrb[0].mxu0 %v349
    %v420 = vpop.f32.mrb[0].mxu0
    %v421 = vadd.f32 %v346, %v420
    %v422 = vpop.f32.mrb[0].mxu0
    %423 = vdwg.mxu0
    %vm424 = vcmask 57344
    %425 = vst.msk [vmem:[#allocation2] sm:$0x1] %vm424, %v421
    // Predicated region
    $region34: #{tpu_custom_call.1} parent=1 // pred_check
      _
    $region35: #{tpu_custom_call.1} parent=1 // pred_check_branch
      %427 = sbr.rel (0) target = $region37
    $region36: #{tpu_custom_call.1} parent=1 // pred_region
      %s429 = ssub.s32 16, 16
      %430 = vsyncadd [#allocation3], %s429
      %s432 = sshll.u32 [#allocation2], 4
      %s433 = int_to_ptr.vmem [resolvable:$true] %s432
      %435 = dma.vmem_to_hbm [thread:$0]  %s433, 16, %s8, [#allocation3]
    $region37: #{tpu_custom_call.1} parent=1 // pred_fallthru
      _
    // Predicated region
    $region38: #{tpu_custom_call.1} parent=1 // pred_check
      _
    $region39: #{tpu_custom_call.1} parent=1 // pred_check_branch
      %437 = sbr.rel (0) target = $region41
    $region40: #{tpu_custom_call.1} parent=1 // pred_region
      %438 = dma.done [#allocation3], 16
    $region41: #{tpu_custom_call.1} parent=1 // pred_fallthru
      _
    %439 = vsyncpa [#allocation3], 1

</llo_original>
